<compile_context>
chip_gen: v5e
topology: v5e:2x2
jax: 0.10.0
libtpu: 0.0.40
codegen_flags: <defaults>
</compile_context>

<pallas_src>
import functools

import jax
import jax.numpy as jnp
from jax.experimental import pallas as pl
from jax.experimental.pallas import tpu as pltpu


def _kl_l1_kernel(*refs, temperature, n_stages, batch, chan, tile_rows,
                  need_mask):
    """One row-tile (same rows of every stage) -> one partial loss scalar."""
    out_ref = refs[-1]
    in_refs = refs[:-1]

    inv_temp = jnp.float32(1.0 / temperature)
    inv_b = jnp.float32(1.0 / batch)
    inv_bc = jnp.float32(1.0 / (batch * chan))

    if need_mask:
        row0 = pl.program_id(0) * tile_rows
        row_ids = jax.lax.broadcasted_iota(jnp.int32, (tile_rows, 1), 0) + row0
        valid = row_ids < batch

    total = jnp.float32(0.0)
    for i in range(n_stages):                       # static unroll, small N
        s = in_refs[2 * i][...].astype(jnp.float32)       # (tile_rows, C)
        t = in_refs[2 * i + 1][...].astype(jnp.float32)   # (tile_rows, C)

        s_sc = s * inv_temp
        t_sc = t * inv_temp

        # Student log-sum-exp (log_softmax denominator); log_p_s itself is
        # never materialized (folded below).
        s_max = jnp.max(s_sc, axis=1, keepdims=True)
        s_shift = s_sc - s_max
        s_lse = jnp.log(jnp.sum(jnp.exp(s_shift), axis=1, keepdims=True))

        # Teacher softmax folded into the KL row term:
        #   KL_row = (sum_c t_exp*(t_shift - s_shift)) / t_sum
        #            + s_lse - log(t_sum)
        t_max = jnp.max(t_sc, axis=1, keepdims=True)
        t_shift = t_sc - t_max
        t_exp = jnp.exp(t_shift)
        t_sum = jnp.sum(t_exp, axis=1, keepdims=True)
        inv_t_sum = pl.reciprocal(t_sum, approx=False)    # exact numerics
        kl_rows = (jnp.sum(t_exp * (t_shift - s_shift), axis=1, keepdims=True)
                   * inv_t_sum) + s_lse - jnp.log(t_sum)

        # L1 on the raw (untempered) features.
        l1_rows = jnp.sum(jnp.abs(s - t), axis=1, keepdims=True)

        if need_mask:
            kl_rows = jnp.where(valid, kl_rows, 0.0)
            l1_rows = jnp.where(valid, l1_rows, 0.0)

        total = (total
                 + jnp.sum(kl_rows) * inv_b
                 + jnp.float32(0.1) * jnp.sum(l1_rows) * inv_bc)

    out_ref[0, 0] = total


def kl_l1_loss(g_s, g_t, temperature: float = 0.15, max_tile_rows: int = 2048):
    """g_s, g_t: lists of [B, C] arrays (student / teacher features)."""
    assert len(g_s) == len(g_t) and len(g_s) > 0
    n_stages = len(g_s)
    batch, chan = g_s[0].shape
    for s, t in zip(g_s, g_t):
        assert s.shape == (batch, chan) and t.shape == (batch, chan)

    in_dtype = jnp.dtype(g_s[0].dtype)
    itemsize = in_dtype.itemsize
    # Sublane granularity for this dtype: 8 (f32), 16 (bf16), 32 (int8/fp8).
    sub = max(8, 32 // max(itemsize, 1))

    # VMEM-budget-aware tile rows: 2*n_stages inputs x 2 pipeline buffers of
    # (tile_rows, chan) in the input dtype, plus the f32 working copies.
    try:
        vmem_cap = int(pltpu.get_tpu_info().vmem_capacity_bytes)
    except Exception:
        vmem_cap = 64 << 20            # conservative (v7x per-TC physical)
    budget = vmem_cap // 4             # >= 2x headroom under half of VMEM
    bytes_per_row = 2 * n_stages * (2 * chan * itemsize   # double-buffered DMA
                                    + 3 * chan * 4)       # f32 temporaries
    cap_rows = max(sub, budget // max(bytes_per_row, 1))
    tile_rows = int(min(max_tile_rows, cap_rows))

    if batch <= tile_rows:
        tile_rows = batch                          # single tile, no masking
    else:
        tile_rows = max(sub, (tile_rows // sub) * sub)
        # Large inputs: ensure >= 2 parallel tiles so both v7x TensorCores get
        # work (measured no-op on single-TC v5e/v6e, zero cost there).
        half = ((batch + 1) // 2 + sub - 1) // sub * sub
        tile_rows = min(tile_rows, max(sub, half))

    num_tiles = int(pl.cdiv(batch, tile_rows))
    need_mask = (batch % tile_rows) != 0

    kernel = functools.partial(
        _kl_l1_kernel, temperature=temperature, n_stages=n_stages,
        batch=batch, chan=chan, tile_rows=tile_rows, need_mask=need_mask)

    inputs = []
    in_specs = []
    for s, t in zip(g_s, g_t):
        inputs += [s, t]
        in_specs += [pl.BlockSpec((tile_rows, chan), lambda i: (i, 0)),
                     pl.BlockSpec((tile_rows, chan), lambda i: (i, 0))]

    partials = pl.pallas_call(
        kernel,
        out_shape=jax.ShapeDtypeStruct((num_tiles, 1), jnp.float32),
        grid_spec=pltpu.PrefetchScalarGridSpec(
            num_scalar_prefetch=0,
            grid=(num_tiles,),
            in_specs=in_specs,
            out_specs=pl.BlockSpec((1, 1), lambda i: (i, 0),
                                   memory_space=pltpu.MemorySpace.SMEM),
        ),
        compiler_params=pltpu.CompilerParams(
            dimension_semantics=("parallel",),        # tiles are independent
            vmem_limit_bytes=vmem_cap // 2),
    )(*inputs)
    return jnp.sum(partials)


def _reference(g_s, g_t, temperature=0.15):
    """Pure-JAX reference of the PyTorch forward (for sanity checks)."""
    loss = jnp.float32(0.0)
    for s, t in zip(g_s, g_t):
        s = s.astype(jnp.float32)
        t = t.astype(jnp.float32)
        log_p_s = jax.nn.log_softmax(s / temperature, axis=1)
        p_t = jax.nn.softmax(t / temperature, axis=1)
        log_p_t = jax.nn.log_softmax(t / temperature, axis=1)
        kl = jnp.sum(p_t * (log_p_t - log_p_s)) / s.shape[0]
        l1 = jnp.mean(jnp.abs(s - t))
        loss = loss + kl + 0.1 * l1
    return loss


def _make_inputs(key, n_stages, batch, chan, dtype=jnp.float32):
    keys = jax.random.split(key, 2 * n_stages)
    g_s = [jax.random.normal(keys[2 * i], (batch, chan)).astype(dtype)
           for i in range(n_stages)]
    g_t = [jax.random.normal(keys[2 * i + 1], (batch, chan)).astype(dtype)
           for i in range(n_stages)]
    return g_s, g_t


if __name__ == "__main__":
    key = jax.random.PRNGKey(0)
    k1, k2, k3 = jax.random.split(key, 3)

    # 1) Shipped shape from the docstring ("g_s B 128"): single-tile fast path.
    g_s, g_t = _make_inputs(k1, n_stages=2, batch=8, chan=128)
    loss = jax.block_until_ready(kl_l1_loss(g_s, g_t, temperature=0.15))
    ref = _reference(g_s, g_t, temperature=0.15)
    assert jnp.allclose(loss, ref, rtol=1e-4, atol=1e-4), (loss, ref)

    # 2) Ragged batch + forced tiling: exercises the masked multi-tile path.
    g_s, g_t = _make_inputs(k2, n_stages=2, batch=20, chan=128)
    loss = jax.block_until_ready(
        kl_l1_loss(g_s, g_t, temperature=0.15, max_tile_rows=8))
    ref = _reference(g_s, g_t, temperature=0.15)
    assert jnp.allclose(loss, ref, rtol=1e-4, atol=1e-4), (loss, ref)

    # 3) bf16 features stay bf16 over HBM; kernel upcasts after the DMA.
    g_s, g_t = _make_inputs(k3, n_stages=2, batch=8, chan=128,
                            dtype=jnp.bfloat16)
    loss = jax.block_until_ready(kl_l1_loss(g_s, g_t, temperature=0.15))
    ref = _reference(g_s, g_t, temperature=0.15)
    assert jnp.allclose(loss, ref, rtol=2e-3, atol=2e-3), (loss, ref)

    print("KERNEL_OK")
</pallas_src>

<mosaic_0001>
module attributes {stable_mosaic.version = 11 : i64} {
  func.func @_kl_l1_kernel(%arg0: i32, %arg1: memref<8x128xf32, #tpu.memory_space<vmem>>, %arg2: memref<8x128xf32, #tpu.memory_space<vmem>>, %arg3: memref<8x128xf32, #tpu.memory_space<vmem>>, %arg4: memref<8x128xf32, #tpu.memory_space<vmem>>, %arg5: memref<1x1xf32, #tpu.memory_space<smem>>) attributes {dimension_semantics = [#tpu.dimension_semantics<parallel>], iteration_bounds = array<i64: 1>, scalar_prefetch = 0 : i64, scratch_operands = 0 : i64, tpu.core_type = #tpu.core_type<tc>, window_params = [{transform_indices = @transform_0, window_bounds = array<i64: 8, 128>}, {transform_indices = @transform_1, window_bounds = array<i64: 8, 128>}, {transform_indices = @transform_2, window_bounds = array<i64: 8, 128>}, {transform_indices = @transform_3, window_bounds = array<i64: 8, 128>}, {transform_indices = @transform_4, window_bounds = array<i64: 1, 1>}]} {
    %c0 = arith.constant 0 : index
    %c0_0 = arith.constant 0 : index
    %0 = vector.load %arg1[%c0, %c0_0] : memref<8x128xf32, #tpu.memory_space<vmem>>, vector<8x128xf32>
    %c0_1 = arith.constant 0 : index
    %c0_2 = arith.constant 0 : index
    %1 = vector.load %arg2[%c0_1, %c0_2] : memref<8x128xf32, #tpu.memory_space<vmem>>, vector<8x128xf32>
    %cst = arith.constant 6.66666651 : f32
    %2 = vector.broadcast %cst : f32 to vector<8x128xf32>
    %3 = arith.mulf %0, %2 : vector<8x128xf32>
    %cst_3 = arith.constant 6.66666651 : f32
    %4 = vector.broadcast %cst_3 : f32 to vector<8x128xf32>
    %5 = arith.mulf %1, %4 : vector<8x128xf32>
    %cst_4 = arith.constant dense<0xFF800000> : vector<8xf32>
    %6 = vector.multi_reduction <maximumf>, %3, %cst_4 [1] : vector<8x128xf32> to vector<8xf32>
    %7 = vector.shape_cast %6 : vector<8xf32> to vector<8x1xf32>
    %8 = vector.broadcast %7 : vector<8x1xf32> to vector<8x128xf32>
    %9 = arith.subf %3, %8 : vector<8x128xf32>
    %10 = math.exp %9 : vector<8x128xf32>
    %cst_5 = arith.constant dense<0.000000e+00> : vector<8xf32>
    %11 = vector.multi_reduction <add>, %10, %cst_5 [1] : vector<8x128xf32> to vector<8xf32>
    %12 = vector.shape_cast %11 : vector<8xf32> to vector<8x1xf32>
    %13 = math.log %12 : vector<8x1xf32>
    %cst_6 = arith.constant dense<0xFF800000> : vector<8xf32>
    %14 = vector.multi_reduction <maximumf>, %5, %cst_6 [1] : vector<8x128xf32> to vector<8xf32>
    %15 = vector.shape_cast %14 : vector<8xf32> to vector<8x1xf32>
    %16 = vector.broadcast %15 : vector<8x1xf32> to vector<8x128xf32>
    %17 = arith.subf %5, %16 : vector<8x128xf32>
    %18 = math.exp %17 : vector<8x128xf32>
    %cst_7 = arith.constant dense<0.000000e+00> : vector<8xf32>
    %19 = vector.multi_reduction <add>, %18, %cst_7 [1] : vector<8x128xf32> to vector<8xf32>
    %20 = vector.shape_cast %19 : vector<8xf32> to vector<8x1xf32>
    %21 = tpu.reciprocal %20 : vector<8x1xf32> -> vector<8x1xf32>
    %22 = arith.subf %17, %9 : vector<8x128xf32>
    %23 = arith.mulf %18, %22 : vector<8x128xf32>
    %cst_8 = arith.constant dense<0.000000e+00> : vector<8xf32>
    %24 = vector.multi_reduction <add>, %23, %cst_8 [1] : vector<8x128xf32> to vector<8xf32>
    %25 = vector.shape_cast %24 : vector<8xf32> to vector<8x1xf32>
    %26 = arith.mulf %25, %21 : vector<8x1xf32>
    %27 = arith.addf %26, %13 : vector<8x1xf32>
    %28 = math.log %20 : vector<8x1xf32>
    %29 = arith.subf %27, %28 : vector<8x1xf32>
    %30 = arith.subf %0, %1 : vector<8x128xf32>
    %31 = math.absf %30 : vector<8x128xf32>
    %cst_9 = arith.constant dense<0.000000e+00> : vector<8xf32>
    %32 = vector.multi_reduction <add>, %31, %cst_9 [1] : vector<8x128xf32> to vector<8xf32>
    %33 = vector.shape_cast %32 : vector<8xf32> to vector<8x1xf32>
    %34 = vector.shape_cast %29 : vector<8x1xf32> to vector<1x8x1xf32>
    %cst_10 = arith.constant dense<0.000000e+00> : vector<1xf32>
    %35 = vector.multi_reduction <add>, %34, %cst_10 [1, 2] : vector<1x8x1xf32> to vector<1xf32>
    %36 = vector.shape_cast %35 : vector<1xf32> to vector<1x1x1xf32>
    %37 = vector.extract %36[0, 0, 0] : f32 from vector<1x1x1xf32>
    %cst_11 = arith.constant 1.250000e-01 : f32
    %38 = arith.mulf %37, %cst_11 : f32
    %cst_12 = arith.constant 0.000000e+00 : f32
    %39 = arith.addf %cst_12, %38 : f32
    %40 = vector.shape_cast %33 : vector<8x1xf32> to vector<1x8x1xf32>
    %cst_13 = arith.constant dense<0.000000e+00> : vector<1xf32>
    %41 = vector.multi_reduction <add>, %40, %cst_13 [1, 2] : vector<1x8x1xf32> to vector<1xf32>
    %42 = vector.shape_cast %41 : vector<1xf32> to vector<1x1x1xf32>
    %43 = vector.extract %42[0, 0, 0] : f32 from vector<1x1x1xf32>
    %cst_14 = arith.constant 1.000000e-01 : f32
    %44 = arith.mulf %cst_14, %43 : f32
    %cst_15 = arith.constant 9.765625E-4 : f32
    %45 = arith.mulf %44, %cst_15 : f32
    %46 = arith.addf %39, %45 : f32
    %c0_16 = arith.constant 0 : index
    %c0_17 = arith.constant 0 : index
    %47 = vector.load %arg3[%c0_16, %c0_17] : memref<8x128xf32, #tpu.memory_space<vmem>>, vector<8x128xf32>
    %c0_18 = arith.constant 0 : index
    %c0_19 = arith.constant 0 : index
    %48 = vector.load %arg4[%c0_18, %c0_19] : memref<8x128xf32, #tpu.memory_space<vmem>>, vector<8x128xf32>
    %cst_20 = arith.constant 6.66666651 : f32
    %49 = vector.broadcast %cst_20 : f32 to vector<8x128xf32>
    %50 = arith.mulf %47, %49 : vector<8x128xf32>
    %cst_21 = arith.constant 6.66666651 : f32
    %51 = vector.broadcast %cst_21 : f32 to vector<8x128xf32>
    %52 = arith.mulf %48, %51 : vector<8x128xf32>
    %cst_22 = arith.constant dense<0xFF800000> : vector<8xf32>
    %53 = vector.multi_reduction <maximumf>, %50, %cst_22 [1] : vector<8x128xf32> to vector<8xf32>
    %54 = vector.shape_cast %53 : vector<8xf32> to vector<8x1xf32>
    %55 = vector.broadcast %54 : vector<8x1xf32> to vector<8x128xf32>
    %56 = arith.subf %50, %55 : vector<8x128xf32>
    %57 = math.exp %56 : vector<8x128xf32>
    %cst_23 = arith.constant dense<0.000000e+00> : vector<8xf32>
    %58 = vector.multi_reduction <add>, %57, %cst_23 [1] : vector<8x128xf32> to vector<8xf32>
    %59 = vector.shape_cast %58 : vector<8xf32> to vector<8x1xf32>
    %60 = math.log %59 : vector<8x1xf32>
    %cst_24 = arith.constant dense<0xFF800000> : vector<8xf32>
    %61 = vector.multi_reduction <maximumf>, %52, %cst_24 [1] : vector<8x128xf32> to vector<8xf32>
    %62 = vector.shape_cast %61 : vector<8xf32> to vector<8x1xf32>
    %63 = vector.broadcast %62 : vector<8x1xf32> to vector<8x128xf32>
    %64 = arith.subf %52, %63 : vector<8x128xf32>
    %65 = math.exp %64 : vector<8x128xf32>
    %cst_25 = arith.constant dense<0.000000e+00> : vector<8xf32>
    %66 = vector.multi_reduction <add>, %65, %cst_25 [1] : vector<8x128xf32> to vector<8xf32>
    %67 = vector.shape_cast %66 : vector<8xf32> to vector<8x1xf32>
    %68 = tpu.reciprocal %67 : vector<8x1xf32> -> vector<8x1xf32>
    %69 = arith.subf %64, %56 : vector<8x128xf32>
    %70 = arith.mulf %65, %69 : vector<8x128xf32>
    %cst_26 = arith.constant dense<0.000000e+00> : vector<8xf32>
    %71 = vector.multi_reduction <add>, %70, %cst_26 [1] : vector<8x128xf32> to vector<8xf32>
    %72 = vector.shape_cast %71 : vector<8xf32> to vector<8x1xf32>
    %73 = arith.mulf %72, %68 : vector<8x1xf32>
    %74 = arith.addf %73, %60 : vector<8x1xf32>
    %75 = math.log %67 : vector<8x1xf32>
    %76 = arith.subf %74, %75 : vector<8x1xf32>
    %77 = arith.subf %47, %48 : vector<8x128xf32>
    %78 = math.absf %77 : vector<8x128xf32>
    %cst_27 = arith.constant dense<0.000000e+00> : vector<8xf32>
    %79 = vector.multi_reduction <add>, %78, %cst_27 [1] : vector<8x128xf32> to vector<8xf32>
    %80 = vector.shape_cast %79 : vector<8xf32> to vector<8x1xf32>
    %81 = vector.shape_cast %76 : vector<8x1xf32> to vector<1x8x1xf32>
    %cst_28 = arith.constant dense<0.000000e+00> : vector<1xf32>
    %82 = vector.multi_reduction <add>, %81, %cst_28 [1, 2] : vector<1x8x1xf32> to vector<1xf32>
    %83 = vector.shape_cast %82 : vector<1xf32> to vector<1x1x1xf32>
    %84 = vector.extract %83[0, 0, 0] : f32 from vector<1x1x1xf32>
    %cst_29 = arith.constant 1.250000e-01 : f32
    %85 = arith.mulf %84, %cst_29 : f32
    %86 = arith.addf %46, %85 : f32
    %87 = vector.shape_cast %80 : vector<8x1xf32> to vector<1x8x1xf32>
    %cst_30 = arith.constant dense<0.000000e+00> : vector<1xf32>
    %88 = vector.multi_reduction <add>, %87, %cst_30 [1, 2] : vector<1x8x1xf32> to vector<1xf32>
    %89 = vector.shape_cast %88 : vector<1xf32> to vector<1x1x1xf32>
    %90 = vector.extract %89[0, 0, 0] : f32 from vector<1x1x1xf32>
    %cst_31 = arith.constant 1.000000e-01 : f32
    %91 = arith.mulf %cst_31, %90 : f32
    %cst_32 = arith.constant 9.765625E-4 : f32
    %92 = arith.mulf %91, %cst_32 : f32
    %93 = arith.addf %86, %92 : f32
    %c0_33 = arith.constant 0 : index
    %c0_34 = arith.constant 0 : index
    %94 = memref.load %arg5[%c0_33, %c0_34] : memref<1x1xf32, #tpu.memory_space<smem>>
    memref.store %93, %arg5[%c0_33, %c0_34] : memref<1x1xf32, #tpu.memory_space<smem>>
    return
  }
  func.func @transform_0(%arg0: i32) -> (i32, i32) {
    %c0_i32 = arith.constant 0 : i32
    %c0_i32_0 = arith.constant 0 : i32
    return %arg0, %c0_i32 : i32, i32
  }
  func.func @transform_1(%arg0: i32) -> (i32, i32) {
    %c0_i32 = arith.constant 0 : i32
    %c0_i32_0 = arith.constant 0 : i32
    return %arg0, %c0_i32 : i32, i32
  }
  func.func @transform_2(%arg0: i32) -> (i32, i32) {
    %c0_i32 = arith.constant 0 : i32
    %c0_i32_0 = arith.constant 0 : i32
    return %arg0, %c0_i32 : i32, i32
  }
  func.func @transform_3(%arg0: i32) -> (i32, i32) {
    %c0_i32 = arith.constant 0 : i32
    %c0_i32_0 = arith.constant 0 : i32
    return %arg0, %c0_i32 : i32, i32
  }
  func.func @transform_4(%arg0: i32) -> (i32, i32) {
    %c0_i32 = arith.constant 0 : i32
    %c0_i32_0 = arith.constant 0 : i32
    return %arg0, %c0_i32 : i32, i32
  }
}

</mosaic_0001>

<llo_original>
// kernel: tpu_custom_call.1
$region0: #{tpu_custom_call.1}
  #allocation0 [shape = 'u32[]', space=smem, size = 0x4, offset = 0x4, fixed_abs, tag = 'smem constant byte address 0x4 - core index']
  #allocation1 [shape = 'u32[72,128]{1,0:T(1,128)}', space=vmem, size = 0x9000, scoped, tag = 'internal scratch']
  %s0 = inlined_call_operand.hbm [shape: f32[8,128], index: 0, kind: input, shape index: {}]
  %s1 = inlined_call_operand.hbm [shape: f32[8,128], index: 1, kind: input, shape index: {}]
  %s2 = inlined_call_operand.hbm [shape: f32[8,128], index: 2, kind: input, shape index: {}]
  %s3 = inlined_call_operand.hbm [shape: f32[8,128], index: 3, kind: input, shape index: {}]
  %s4 = inlined_call_operand.hbm [shape: f32[1,1], index: 4, kind: output, shape index: {}]
  %s5 = sld [smem:[#allocation0]]
  $region42: #{tpu_custom_call.1} parent=0
    _
  %s7 = ssub.s32 1, %s5
  %s8 = scalar_select 0, %s7, %s5
  $region1: #{tpu_custom_call.1} parent=0
    #allocation2 [shape = 'u8[4096]{0}', space=vmem, size = 0x1000, scoped, tag = 'input window, operand 0, single buffered']
    #allocation3 [shape = 's32[1]{0}', space=sflag, size = 0x4, scoped, tag = 'scoped memory for tpu_custom_call.1']
    #allocation4 [shape = 's32[1]{0}', space=sflag, size = 0x4, scoped, tag = 'scoped memory for tpu_custom_call.1']
    #allocation5 [shape = 'u8[4096]{0}', space=vmem, size = 0x1000, scoped, tag = 'input window, operand 1, single buffered']
    #allocation6 [shape = 's32[1]{0}', space=sflag, size = 0x4, scoped, tag = 'scoped memory for tpu_custom_call.1']
    #allocation7 [shape = 'u8[4096]{0}', space=vmem, size = 0x1000, scoped, tag = 'input window, operand 2, single buffered']
    #allocation8 [shape = 'u8[4096]{0}', space=vmem, size = 0x1000, scoped, tag = 'input window, operand 3, single buffered']
    #allocation9 [shape = 's32[1]{0}', space=sflag, size = 0x4, scoped, tag = 'scoped memory for tpu_custom_call.1']
    #allocation10 [shape = 'u8[512]{0}', space=smem, size = 0x200, scoped, tag = 'output window, operand 0, single buffered']
    %9 = vsyncpa [#allocation3], 0
    %10 = vsyncpa [#allocation6], 0
    %11 = vsyncpa [#allocation9], 0
    %12 = vsyncpa [#allocation4], 0
    // Predicated region
    $region2: #{tpu_custom_call.1} parent=1 // pred_check
      _
    $region3: #{tpu_custom_call.1} parent=1 // pred_check_branch
      %14 = sbr.rel (0) target = $region5
    $region4: #{tpu_custom_call.1} parent=1 // pred_region
      %16 = vsyncadd [#allocation3], 0
      %s18 = sshll.u32 %s0, 4
      %s19 = int_to_ptr.hbm [resolvable:$true] %s18
      %s20 = sshll.u32 [#allocation2], 4
      %s21 = int_to_ptr.vmem [resolvable:$true] %s20
      %23 = dma.hbm_to_vmem [thread:$0]  %s19, 128, %s21, [#allocation3]
    $region5: #{tpu_custom_call.1} parent=1 // pred_fallthru
      _
    // Predicated region
    $region6: #{tpu_custom_call.1} parent=1 // pred_check
      _
    $region7: #{tpu_custom_call.1} parent=1 // pred_check_branch
      %25 = sbr.rel (0) target = $region9
    $region8: #{tpu_custom_call.1} parent=1 // pred_region
      %27 = vsyncadd [#allocation6], 0
      %s29 = sshll.u32 %s1, 4
      %s30 = int_to_ptr.hbm [resolvable:$true] %s29
      %s31 = sshll.u32 [#allocation5], 4
      %s32 = int_to_ptr.vmem [resolvable:$true] %s31
      %34 = dma.hbm_to_vmem [thread:$0]  %s30, 128, %s32, [#allocation6]
    $region9: #{tpu_custom_call.1} parent=1 // pred_fallthru
      _
    // Predicated region
    $region10: #{tpu_custom_call.1} parent=1 // pred_check
      _
    $region11: #{tpu_custom_call.1} parent=1 // pred_check_branch
      %36 = sbr.rel (0) target = $region13
    $region12: #{tpu_custom_call.1} parent=1 // pred_region
      %38 = vsyncadd [#allocation6], 0
      %s40 = sshll.u32 %s2, 4
      %s41 = int_to_ptr.hbm [resolvable:$true] %s40
      %s42 = sshll.u32 [#allocation7], 4
      %s43 = int_to_ptr.vmem [resolvable:$true] %s42
      %45 = dma.hbm_to_vmem [thread:$0]  %s41, 128, %s43, [#allocation6]
    $region13: #{tpu_custom_call.1} parent=1 // pred_fallthru
      _
    // Predicated region
    $region14: #{tpu_custom_call.1} parent=1 // pred_check
      _
    $region15: #{tpu_custom_call.1} parent=1 // pred_check_branch
      %47 = sbr.rel (0) target = $region17
    $region16: #{tpu_custom_call.1} parent=1 // pred_region
      %49 = vsyncadd [#allocation9], 0
      %s51 = sshll.u32 %s3, 4
      %s52 = int_to_ptr.hbm [resolvable:$true] %s51
      %s53 = sshll.u32 [#allocation8], 4
      %s54 = int_to_ptr.vmem [resolvable:$true] %s53
      %56 = dma.hbm_to_vmem [thread:$0]  %s52, 128, %s54, [#allocation9]
    $region17: #{tpu_custom_call.1} parent=1 // pred_fallthru
      _
    // Predicated region
    $region18: #{tpu_custom_call.1} parent=1 // pred_check
      _
    $region19: #{tpu_custom_call.1} parent=1 // pred_check_branch
      %58 = sbr.rel (0) target = $region21
    $region20: #{tpu_custom_call.1} parent=1 // pred_region
      %60 = dma.done [#allocation3], 128
    $region21: #{tpu_custom_call.1} parent=1 // pred_fallthru
      _
    // Predicated region
    $region22: #{tpu_custom_call.1} parent=1 // pred_check
      _
    $region23: #{tpu_custom_call.1} parent=1 // pred_check_branch
      %62 = sbr.rel (0) target = $region25
    $region24: #{tpu_custom_call.1} parent=1 // pred_region
      %64 = dma.done [#allocation6], 128
    $region25: #{tpu_custom_call.1} parent=1 // pred_fallthru
      _
    // Predicated region
    $region26: #{tpu_custom_call.1} parent=1 // pred_check
      _
    $region27: #{tpu_custom_call.1} parent=1 // pred_check_branch
      %66 = sbr.rel (0) target = $region29
    $region28: #{tpu_custom_call.1} parent=1 // pred_region
      %68 = dma.done [#allocation6], 128
    $region29: #{tpu_custom_call.1} parent=1 // pred_fallthru
      _
    // Predicated region
    $region30: #{tpu_custom_call.1} parent=1 // pred_check
      _
    $region31: #{tpu_custom_call.1} parent=1 // pred_check_branch
      %70 = sbr.rel (0) target = $region33
    $region32: #{tpu_custom_call.1} parent=1 // pred_region
      %72 = dma.done [#allocation9], 128
    $region33: #{tpu_custom_call.1} parent=1 // pred_fallthru
      _
    %v73 = vld [vmem:[#allocation2] sm:$0xff]
    %v74 = vld [vmem:[#allocation5] sm:$0xff]
    %v75 = vmul.f32 %v73, 6.6666665
    %v76 = vmul.f32 %v74, 6.6666665
    %77 = vmax.xlane.f32.xlu0 %v75
    %v78 = vpop.xlane.xlu0 %77
    %v79 = vsub.f32 %v75, %v78
    %v80 = vmul.f32 %v79, 1.442695
    %v81 = vpow.pop %v80
    %82 = vadd.xlane.f32.xlu0 %v81
    %v83 = vpop.xlane.xlu0 %82
    %v84 = vlog2.pop %v83
    %v85 = vmul.f32 %v84, 0.6931472
    %86 = vmax.xlane.f32.xlu0 %v76
    %v87 = vpop.xlane.xlu0 %86
    %v88 = vsub.f32 %v76, %v87
    %v89 = vmul.f32 %v88, 1.442695
    %v90 = vpow.pop %v89
    %91 = vadd.xlane.f32.xlu0 %v90
    %v92 = vpop.xlane.xlu0 %91
    %v93 = vrcp.pop %v92
    %v94 = vmul.f32 %v92, %v93
    %v95 = vsub.f32 1.0, %v94
    %v96 = vmul.f32 %v93, %v95
    %v97 = vadd.f32 %v93, %v96
    %vm98 = vweird.f32 %v92
    %vm99 = vweird.f32 %v93
    %vm100 = vmor %vm98, %vm99
    %v101 = vsel %vm100, %v93, %v97
    %v102 = vand.u32 2147483647, %v92
    %vm103 = vcmp.eq.f32.partialorder %v102, 8.507059e+37
    %v104 = vand.u32 %v92, 2147483648
    %v105 = vor.u32 1.1754944e-38, %v104
    %v106 = vsel %vm103, %v105, %v101
    %v107 = vsub.f32 %v88, %v79
    %v108 = vmul.f32 %v90, %v107
    %109 = vadd.xlane.f32.xlu0 %v108
    %v110 = vpop.xlane.xlu0 %109
    %v111 = vmul.f32 %v110, %v106
    %v112 = vadd.f32 %v111, %v85
    %v113 = vlog2.pop %v92
    %v114 = vmul.f32 %v113, 0.6931472
    %v115 = vsub.f32 %v112, %v114
    %v116 = vsub.f32 %v73, %v74
    %v117 = vand.u32 2147483647, %v116
    %118 = vadd.xlane.f32.xlu0 %v117
    %v119 = vpop.xlane.xlu0 %118
    %vm120 = vcmask 7168
    %v121 = vsel %vm120, %v115, 0.0
    %122 = vadd.xlane.f32.xlu0 %v121
    %v123 = vpop.xlane.xlu0 %122
    %v124 = vrot.slane %v123, 4
    %v125 = vadd.f32 %v123, %v124
    %v126 = vrot.slane %v125, 2
    %v127 = vadd.f32 %v125, %v126
    %v128 = vrot.slane %v127, 1
    %v129 = vadd.f32 %v127, %v128
    %s130 = vtos %v129
    %s131 = smul.f32 %s130, 0.125
    %s132 = sadd.f32 %s131, 0.0
    %v133 = vsel %vm120, %v119, 0.0
    %134 = vadd.xlane.f32.xlu0 %v133
    %v135 = vpop.xlane.xlu0 %134
    %v136 = vrot.slane %v135, 4
    %v137 = vadd.f32 %v135, %v136
    %v138 = vrot.slane %v137, 2
    %v139 = vadd.f32 %v137, %v138
    %v140 = vrot.slane %v139, 1
    %v141 = vadd.f32 %v139, %v140
    %s142 = vtos %v141
    %s143 = smul.f32 %s142, 0.1
    %s144 = smul.f32 %s143, 0.0009765625
    %s145 = sadd.f32 %s132, %s144
    %v146 = vld [vmem:[#allocation7] sm:$0xff]
    %v147 = vld [vmem:[#allocation8] sm:$0xff]
    %v148 = vmul.f32 %v146, 6.6666665
    %v149 = vmul.f32 %v147, 6.6666665
    %150 = vmax.xlane.f32.xlu0 %v148
    %v151 = vpop.xlane.xlu0 %150
    %v152 = vsub.f32 %v148, %v151
    %v153 = vmul.f32 %v152, 1.442695
    %v154 = vpow.pop %v153
    %155 = vadd.xlane.f32.xlu0 %v154
    %v156 = vpop.xlane.xlu0 %155
    %v157 = vlog2.pop %v156
    %v158 = vmul.f32 %v157, 0.6931472
    %159 = vmax.xlane.f32.xlu0 %v149
    %v160 = vpop.xlane.xlu0 %159
    %v161 = vsub.f32 %v149, %v160
    %v162 = vmul.f32 %v161, 1.442695
    %v163 = vpow.pop %v162
    %164 = vadd.xlane.f32.xlu0 %v163
    %v165 = vpop.xlane.xlu0 %164
    %v166 = vrcp.pop %v165
    %v167 = vmul.f32 %v165, %v166
    %v168 = vsub.f32 1.0, %v167
    %v169 = vmul.f32 %v166, %v168
    %v170 = vadd.f32 %v166, %v169
    %vm171 = vweird.f32 %v165
    %vm172 = vweird.f32 %v166
    %vm173 = vmor %vm171, %vm172
    %v174 = vsel %vm173, %v166, %v170
    %v175 = vand.u32 2147483647, %v165
    %vm176 = vcmp.eq.f32.partialorder %v175, 8.507059e+37
    %v177 = vand.u32 %v165, 2147483648
    %v178 = vor.u32 1.1754944e-38, %v177
    %v179 = vsel %vm176, %v178, %v174
    %v180 = vsub.f32 %v161, %v152
    %v181 = vmul.f32 %v163, %v180
    %182 = vadd.xlane.f32.xlu0 %v181
    %v183 = vpop.xlane.xlu0 %182
    %v184 = vmul.f32 %v183, %v179
    %v185 = vadd.f32 %v184, %v158
    %v186 = vlog2.pop %v165
    %v187 = vmul.f32 %v186, 0.6931472
    %v188 = vsub.f32 %v185, %v187
    %v189 = vsub.f32 %v146, %v147
    %v190 = vand.u32 2147483647, %v189
    %191 = vadd.xlane.f32.xlu0 %v190
    %v192 = vpop.xlane.xlu0 %191
    %v193 = vsel %vm120, %v188, 0.0
    %194 = vadd.xlane.f32.xlu0 %v193
    %v195 = vpop.xlane.xlu0 %194
    %v196 = vrot.slane %v195, 4
    %v197 = vadd.f32 %v195, %v196
    %v198 = vrot.slane %v197, 2
    %v199 = vadd.f32 %v197, %v198
    %v200 = vrot.slane %v199, 1
    %v201 = vadd.f32 %v199, %v200
    %s202 = vtos %v201
    %s203 = smul.f32 %s202, 0.125
    %s204 = sadd.f32 %s145, %s203
    %v205 = vsel %vm120, %v192, 0.0
    %206 = vadd.xlane.f32.xlu0 %v205
    %v207 = vpop.xlane.xlu0 %206
    %v208 = vrot.slane %v207, 4
    %v209 = vadd.f32 %v207, %v208
    %v210 = vrot.slane %v209, 2
    %v211 = vadd.f32 %v209, %v210
    %v212 = vrot.slane %v211, 1
    %v213 = vadd.f32 %v211, %v212
    %s214 = vtos %v213
    %s215 = smul.f32 %s214, 0.1
    %s216 = smul.f32 %s215, 0.0009765625
    %s217 = sadd.f32 %s204, %s216
    %s218 = scalar_lea.smem [#allocation10], 0
    %219 = sst [smem:[%s218]] %s217
    // Predicated region
    $region34: #{tpu_custom_call.1} parent=1 // pred_check
      _
    $region35: #{tpu_custom_call.1} parent=1 // pred_check_branch
      %221 = sbr.rel (0) target = $region37
    $region36: #{tpu_custom_call.1} parent=1 // pred_region
      %223 = vsyncadd [#allocation4], 0
      %s225 = sshll.u32 %s4, 4
      %s226 = int_to_ptr.hbm [resolvable:$true] %s225
      %228 = dma.smem_to_hbm [#allocation10], 16, %s226, [#allocation4]
    $region37: #{tpu_custom_call.1} parent=1 // pred_fallthru
      _
    // Predicated region
    $region38: #{tpu_custom_call.1} parent=1 // pred_check
      _
    $region39: #{tpu_custom_call.1} parent=1 // pred_check_branch
      %230 = sbr.rel (0) target = $region41
    $region40: #{tpu_custom_call.1} parent=1 // pred_region
      %232 = dma.done [#allocation4], 16
    $region41: #{tpu_custom_call.1} parent=1 // pred_fallthru
      _
    %233 = sfence
    %234 = vsyncpa [#allocation3], 1
    %235 = vsyncpa [#allocation6], 1
    %236 = vsyncpa [#allocation9], 1
    %237 = vsyncpa [#allocation4], 1

</llo_original>
